<compile_context>
chip_gen: v5e
topology: v5e:2x2
jax: 0.10.0
libtpu: 0.0.40
codegen_flags: <defaults>
</compile_context>

<pallas_src>
import functools

import jax
import jax.numpy as jnp
from jax.experimental import pallas as pl
from jax.experimental.pallas import tpu as pltpu


def _round_up(x: int, m: int) -> int:
    return (x + m - 1) // m * m


# Stay comfortably under v7x's 64 MiB/TC physical VMEM; also well under
# v5e/v6e's 128 MiB.  (v5e's *default scoped* limit is only 16 MiB, so we
# always pass an explicit limit.)
_VMEM_CAP_BYTES = 48 * 1024 * 1024


def _fused_linear_relu_kernel(x_ref, w_ref, b_ref, o_ref, *, compute_dtype):
    # x_ref: [tile_n, K] (native dtype), w_ref: [K, M] (compute_dtype),
    # b_ref: [1, M] (f32),               o_ref: [tile_n, M] (out dtype)
    x = x_ref[...].astype(compute_dtype)          # cast fused in-kernel: no extra HBM pass
    y = jnp.dot(x, w_ref[...], preferred_element_type=jnp.float32)
    y = y + b_ref[...]                            # f32 epilogue, bias broadcast over rows
    o_ref[...] = jnp.maximum(y, 0.0).astype(o_ref.dtype)


def _vmem_working_set(tile_n, K, M, x_item, w_item, out_item):
    """Approximate double-buffered VMEM footprint (with tile layout padding)."""
    lane = lambda d: _round_up(d, 128)
    sub = lambda d: _round_up(d, 8)
    x_t = sub(tile_n) * lane(K) * x_item
    w_t = sub(K) * lane(M) * w_item
    b_t = 8 * lane(M) * 4
    o_t = sub(tile_n) * lane(M) * out_item
    return 2 * (x_t + w_t + b_t + o_t)


def fused_linear_relu(x, w, b, *, tile_n=1024, compute_dtype=jnp.bfloat16,
                      out_dtype=None, use_pallas=None):
    """Fused Linear + ReLU over B independent branches.

    x: [B, N, D_in]    stacked branch inputs (any float dtype; cast in-kernel)
    w: [B, D_in, D_out] stacked (transposed-vs-torch) weights
    b: [B, D_out]      stacked biases
    returns [B, N, D_out] in `out_dtype` (default: compute_dtype, i.e. bf16)
    """
    B, N, K = x.shape
    Bw, Kw, M = w.shape
    assert Bw == B and Kw == K and b.shape == (B, M)

    if out_dtype is None:
        out_dtype = compute_dtype
    if use_pallas is None:
        # At a few hundred rows or less, launch/pipeline overhead dominates the
        # matmul on every TPU generation — use a plain fused op instead.
        use_pallas = N >= 256

    w_c = w.astype(compute_dtype)                    # tiny, one-time
    b_c = b.reshape(B, 1, M).astype(jnp.float32)

    if not use_pallas:
        y = jnp.einsum("bnk,bkm->bnm", x.astype(compute_dtype), w_c,
                       preferred_element_type=jnp.float32) + b_c
        return jnp.maximum(y, 0.0).astype(out_dtype)

    # Row tile: multiple of 8 (always legal regardless of N); shrink until the
    # double-buffered working set fits the per-generation-safe VMEM cap.
    tile_n = min(_round_up(tile_n, 8), _round_up(N, 8))
    x_item = jnp.dtype(x.dtype).itemsize
    w_item = jnp.dtype(compute_dtype).itemsize
    out_item = jnp.dtype(out_dtype).itemsize
    while (tile_n > 8 and
           _vmem_working_set(tile_n, K, M, x_item, w_item, out_item) > _VMEM_CAP_BYTES):
        tile_n = max(8, (tile_n // 2) // 8 * 8)

    working_set = _vmem_working_set(tile_n, K, M, x_item, w_item, out_item)
    vmem_limit = int(min(_VMEM_CAP_BYTES,
                         max(3 * working_set // 2, 32 * 1024 * 1024)))

    grid = (B, pl.cdiv(N, tile_n))                   # branch outer, rows inner

    # Exact HBM traffic / flops of this call (no hidden pad/slice passes).
    cost = pl.CostEstimate(
        flops=2 * B * N * K * M,
        transcendentals=0,
        bytes_accessed=(B * N * K * x_item          # x
                        + B * K * M * w_item        # W
                        + B * M * 4                 # b
                        + B * N * M * out_item),    # out
    )

    kernel = functools.partial(_fused_linear_relu_kernel, compute_dtype=compute_dtype)

    # NOTE: W is held fully resident per branch (index_map constant across the
    # inner row axis -> revisit-cached, one DMA per branch).  For very large
    # projection dims add a K-tiling "arbitrary" axis with a VMEM f32 accumulator.
    return pl.pallas_call(
        kernel,
        out_shape=jax.ShapeDtypeStruct((B, N, M), out_dtype),
        grid_spec=pltpu.PrefetchScalarGridSpec(
            num_scalar_prefetch=0,
            grid=grid,
            in_specs=[
                pl.BlockSpec((None, tile_n, K), lambda br, i: (br, i, 0)),
                pl.BlockSpec((None, K, M), lambda br, i: (br, 0, 0)),
                pl.BlockSpec((None, 1, M), lambda br, i: (br, 0, 0)),
            ],
            out_specs=pl.BlockSpec((None, tile_n, M), lambda br, i: (br, i, 0)),
        ),
        compiler_params=pltpu.CompilerParams(
            # Both axes independent: on v7x the 2 TCs can split the branch axis
            # (each core keeps its own W resident for the whole run).
            dimension_semantics=("parallel", "parallel"),
            vmem_limit_bytes=vmem_limit,
        ),
        cost_estimate=cost,
    )(x, w_c, b_c)


class EmbeddingAlignmentGNNPallas:
    """JAX/Pallas port of the two alignment branches of EmbeddingAlignmentGNN."""

    def __init__(self, input_dim: int, output_dim: int, key):
        k1, k2, k3, k4 = jax.random.split(key, 4)
        # Deterministic init mimicking nn.Linear's uniform(-1/sqrt(fan_in), ...)
        bound = 1.0 / (input_dim ** 0.5)
        # stored as [D_in, D_out] (transposed vs torch's [out, in])
        self.img_w = jax.random.uniform(k1, (input_dim, output_dim), jnp.float32,
                                        -bound, bound)
        self.img_b = jax.random.uniform(k2, (output_dim,), jnp.float32, -bound, bound)
        self.txt_w = jax.random.uniform(k3, (input_dim, output_dim), jnp.float32,
                                        -bound, bound)
        self.txt_b = jax.random.uniform(k4, (output_dim,), jnp.float32, -bound, bound)
        # TODO(synk): CLIP model embedding extraction (init_model_and_processor /
        # embedding_texts / embedding_image) is an external pretrained network,
        # not reproducible in-kernel; kernels consume precomputed embeddings.

    def get_aligned_embeddings(self, images_embedding, texts_embedding, *,
                               use_pallas=None):
        """Fused path: both branches in one pallas_call."""
        x = jnp.stack([images_embedding, texts_embedding])      # [2, N, D_in]
        w = jnp.stack([self.img_w, self.txt_w])                 # [2, D_in, D_out]
        b = jnp.stack([self.img_b, self.txt_b])                 # [2, D_out]
        out = fused_linear_relu(x, w, b, use_pallas=use_pallas)
        return out[0], out[1]

    def get_images_embedding(self, images_embedding, *, use_pallas=None):
        return fused_linear_relu(images_embedding[None], self.img_w[None],
                                 self.img_b[None], use_pallas=use_pallas)[0]

    def get_texts_embedding(self, texts_embedding, *, use_pallas=None):
        return fused_linear_relu(texts_embedding[None], self.txt_w[None],
                                 self.txt_b[None], use_pallas=use_pallas)[0]


if __name__ == "__main__":
    key = jax.random.PRNGKey(0)
    k_params, k_img, k_txt = jax.random.split(key, 3)

    input_dim, output_dim = 64, 32
    batch = 8

    model = EmbeddingAlignmentGNNPallas(input_dim, output_dim, k_params)

    # Synthetic "CLIP" embeddings (stand-ins for embedding_image / embedding_texts)
    images_embedding = jax.random.normal(k_img, (batch, input_dim), jnp.float32)
    texts_embedding = jax.random.normal(k_txt, (batch, input_dim), jnp.float32)

    # Force the Pallas path even at this tiny demo size (auto mode would use the
    # plain-jnp fallback for N < 256).
    aligned_img, aligned_txt = model.get_aligned_embeddings(
        images_embedding, texts_embedding, use_pallas=True)
    jax.block_until_ready((aligned_img, aligned_txt))

    assert aligned_img.shape == (batch, output_dim)
    assert aligned_txt.shape == (batch, output_dim)

    # Reference matching the kernel's bf16-compute / f32-accumulate numerics.
    def ref_bf16(x, w, b):
        y = jnp.dot(x.astype(jnp.bfloat16), w.astype(jnp.bfloat16),
                    preferred_element_type=jnp.float32)
        return jnp.maximum(y + b, 0.0)

    ref_img = ref_bf16(images_embedding, model.img_w, model.img_b)
    ref_txt = ref_bf16(texts_embedding, model.txt_w, model.txt_b)
    assert jnp.allclose(aligned_img.astype(jnp.float32), ref_img, atol=2e-2, rtol=2e-2)
    assert jnp.allclose(aligned_txt.astype(jnp.float32), ref_txt, atol=2e-2, rtol=2e-2)

    # Sanity check against the full-f32 PyTorch-equivalent reference
    # (looser tolerance due to bf16 compute / storage).
    ref_img_f32 = jnp.maximum(images_embedding @ model.img_w + model.img_b, 0.0)
    ref_txt_f32 = jnp.maximum(texts_embedding @ model.txt_w + model.txt_b, 0.0)
    assert jnp.allclose(aligned_img.astype(jnp.float32), ref_img_f32, atol=1e-1, rtol=1e-1)
    assert jnp.allclose(aligned_txt.astype(jnp.float32), ref_txt_f32, atol=1e-1, rtol=1e-1)

    print("KERNEL_OK")
</pallas_src>

<mosaic_0001>
module attributes {stable_mosaic.version = 11 : i64} {
  func.func @_fused_linear_relu_kernel(%arg0: i32, %arg1: i32, %arg2: memref<1x8x64xf32, #tpu.memory_space<vmem>>, %arg3: memref<1x64x32xbf16, #tpu.memory_space<vmem>>, %arg4: memref<1x1x32xf32, #tpu.memory_space<vmem>>, %arg5: memref<1x8x32xbf16, #tpu.memory_space<vmem>>) attributes {dimension_semantics = [#tpu.dimension_semantics<parallel>, #tpu.dimension_semantics<parallel>], iteration_bounds = array<i64: 2, 1>, scalar_prefetch = 0 : i64, scratch_operands = 0 : i64, tpu.core_type = #tpu.core_type<tc>, window_params = [{transform_indices = @transform_0, window_bounds = array<i64: 1, 8, 64>}, {transform_indices = @transform_1, window_bounds = array<i64: 1, 64, 32>}, {transform_indices = @transform_2, window_bounds = array<i64: 1, 1, 32>}, {transform_indices = @transform_3, window_bounds = array<i64: 1, 8, 32>}]} {
    %c0 = arith.constant 0 : index
    %c0_0 = arith.constant 0 : index
    %c0_1 = arith.constant 0 : index
    %0 = vector.load %arg2[%c0, %c0_0, %c0_1] : memref<1x8x64xf32, #tpu.memory_space<vmem>>, vector<1x8x64xf32>
    %1 = vector.shape_cast %0 : vector<1x8x64xf32> to vector<8x64xf32>
    %2 = arith.truncf %1 : vector<8x64xf32> to vector<8x64xbf16>
    %c0_2 = arith.constant 0 : index
    %c0_3 = arith.constant 0 : index
    %c0_4 = arith.constant 0 : index
    %3 = vector.load %arg3[%c0_2, %c0_3, %c0_4] : memref<1x64x32xbf16, #tpu.memory_space<vmem>>, vector<1x64x32xbf16>
    %4 = vector.shape_cast %3 : vector<1x64x32xbf16> to vector<64x32xbf16>
    %cst = arith.constant dense<0.000000e+00> : vector<8x32xf32>
    %5 = tpu.matmul %2, %4, %cst {dimension_numbers = #tpu.dot_dimension_numbers<[1], [0], [0], [1], [0, 0, 1, 1], [], []>} : vector<8x64xbf16>, vector<64x32xbf16>, vector<8x32xf32> -> vector<8x32xf32>
    %c0_5 = arith.constant 0 : index
    %c0_6 = arith.constant 0 : index
    %c0_7 = arith.constant 0 : index
    %6 = vector.load %arg4[%c0_5, %c0_6, %c0_7] : memref<1x1x32xf32, #tpu.memory_space<vmem>>, vector<1x1x32xf32>
    %7 = vector.shape_cast %6 : vector<1x1x32xf32> to vector<1x32xf32>
    %8 = vector.broadcast %7 : vector<1x32xf32> to vector<8x32xf32>
    %9 = arith.addf %5, %8 : vector<8x32xf32>
    %cst_8 = arith.constant 0.000000e+00 : f32
    %10 = vector.broadcast %cst_8 : f32 to vector<8x32xf32>
    %11 = arith.maximumf %9, %10 : vector<8x32xf32>
    %12 = arith.truncf %11 : vector<8x32xf32> to vector<8x32xbf16>
    %c0_9 = arith.constant 0 : index
    %c0_10 = arith.constant 0 : index
    %c0_11 = arith.constant 0 : index
    %13 = vector.load %arg5[%c0_9, %c0_10, %c0_11] : memref<1x8x32xbf16, #tpu.memory_space<vmem>>, vector<1x8x32xbf16>
    %14 = vector.shape_cast %13 : vector<1x8x32xbf16> to vector<8x32xbf16>
    %15 = vector.shape_cast %12 : vector<8x32xbf16> to vector<1x8x32xbf16>
    tpu.vector_store %arg5[%c0_9, %c0_10, %c0_11], %15 {strides = array<i32>} : memref<1x8x32xbf16, #tpu.memory_space<vmem>>, vector<1x8x32xbf16>,
    return
  }
  func.func @transform_0(%arg0: i32, %arg1: i32) -> (i32, i32, i32) {
    %c0_i32 = arith.constant 0 : i32
    %c0_i32_0 = arith.constant 0 : i32
    return %arg0, %arg1, %c0_i32 : i32, i32, i32
  }
  func.func @transform_1(%arg0: i32, %arg1: i32) -> (i32, i32, i32) {
    %c0_i32 = arith.constant 0 : i32
    %c0_i32_0 = arith.constant 0 : i32
    %c0_i32_1 = arith.constant 0 : i32
    return %arg0, %c0_i32, %c0_i32_0 : i32, i32, i32
  }
  func.func @transform_2(%arg0: i32, %arg1: i32) -> (i32, i32, i32) {
    %c0_i32 = arith.constant 0 : i32
    %c0_i32_0 = arith.constant 0 : i32
    %c0_i32_1 = arith.constant 0 : i32
    return %arg0, %c0_i32, %c0_i32_0 : i32, i32, i32
  }
  func.func @transform_3(%arg0: i32, %arg1: i32) -> (i32, i32, i32) {
    %c0_i32 = arith.constant 0 : i32
    %c0_i32_0 = arith.constant 0 : i32
    return %arg0, %arg1, %c0_i32 : i32, i32, i32
  }
}

</mosaic_0001>

<llo_original>
// kernel: tpu_custom_call.1
$region0: #{tpu_custom_call.1}
  #allocation0 [shape = 'u32[]', space=smem, size = 0x4, offset = 0x4, fixed_abs, tag = 'smem constant byte address 0x4 - core index']
  #allocation1 [shape = 'u32[72,128]{1,0:T(1,128)}', space=vmem, size = 0x9000, scoped, tag = 'internal scratch']
  %s0 = inlined_call_operand.vmem [shape: f32[2,8,64], index: 0, kind: input, shape index: {}]
  %s1 = inlined_call_operand.vmem [shape: bf16[2,64,32], index: 1, kind: input, shape index: {}]
  %s2 = inlined_call_operand.vmem [shape: f32[2,1,32], index: 2, kind: input, shape index: {}]
  %s3 = inlined_call_operand.hbm [shape: bf16[2,8,32], index: 3, kind: output, shape index: {}]
  %s4 = sld [smem:[#allocation0]]
  $region45: #{tpu_custom_call.1} parent=0
    _
  %s6 = ssub.s32 1, %s4
  %s7 = scalar_select 0, %s6, %s4
  $region1: #{tpu_custom_call.1} parent=0
    #allocation2 [shape = 'u8[4096]{0}', space=vmem, size = 0x1000, scoped, tag = 'output window, operand 0']
    #allocation3 [shape = 's32[2]{0}', space=sflag, size = 0x8, scoped, tag = 'scoped memory for tpu_custom_call.1']
    %8 = vsyncpa [#allocation3], 0
    %s9 = scalar_lea.sflag [#allocation3], 1
    %10 = vsyncpa %s9, 0
    loop: start=0, step=1, limit=4
    $region2: #{tpu_custom_call.1} parent=1 // loop_pre_header
      _
    $region3: #{tpu_custom_call.1} parent=1 // loop_header
      %s12 = sphi 0, %s16
      %p13 = scmp.ge.s32.totalorder %s12, 4
      %s19 = sphi 0, %s31
      %s20 = sphi 0, %s27
      %s21 = sphi 0, %s19
      %s22 = sphi 0, %s20
      %s23 = sphi 0, %s21
      %s24 = sphi 0, %s22
      %s36 = sphi 0, %s38
      %s39 = sphi 0, %s36
      %s40 = sphi 0, %s39
      %s56 = sphi 0, %s40
      %s62 = sphi 0, %s64
      %s65 = sphi 0, %s62
      %s66 = sphi 0, %s65
      %s82 = sphi 0, %s66
      %s88 = sphi 0, %s90
      %s91 = sphi 0, %s88
      %s92 = sphi 0, %s91
      %s108 = sphi 0, %s92
      %s116 = sphi 0, %s118
      %s119 = sphi 0, %s116
      %s120 = sphi 0, %s119
      %s136 = sphi 0, %s120
    $region4: #{tpu_custom_call.1} parent=1 // loop_header_branch
      %15 = sbr.rel (%p13) target = $region8
    $region5: #{tpu_custom_call.1} parent=1 // loop_body
      %s17 = ssub.s32 %s12, 1
      %s18 = ssub.s32 %s12, 2
      %s25 = sadd.s32 1, %s20
      %p26 = scmp.ge.s32.totalorder %s25, 1
      %s27 = scalar_select %p26, 0, %s25
      %s28 = sadd.s32 1, %s19
      %s29 = scalar_select %p26, %s28, %s19
      %p30 = scmp.ge.s32.totalorder %s29, 2
      %s31 = scalar_select %p30, 0, %s29
      %s32 = ssub.s32 %s19, %s31
      %s33 = ssub.s32 %s20, %s27
      %s34 = sor.u32 %s32, %s33
      %p35 = scmp.eq.s32.totalorder %s34, 0
      %s37 = sadd.s32 %s36, 1
      %s38 = scalar_select %p35, %s36, %s37
      %p41 = pneg %p35
      %p42 = scmp.eq.s32.totalorder %s12, 1
      %p43 = por %p41, %p42
      %p44 = scmp.ne.s32.totalorder %s36, %s39
      %p45 = scmp.eq.s32.totalorder %s12, 0
      %p46 = por %p44, %p45
      %p47 = scmp.ne.s32.totalorder %s36, %s39
      %p48 = scmp.eq.s32.totalorder %s17, 1
      %p49 = por %p47, %p48
      %p50 = scmp.ne.s32.totalorder %s39, %s40
      %p51 = scmp.eq.s32.totalorder %s17, 0
      %p52 = por %p50, %p51
      %p53 = scmp.ne.s32.totalorder %s39, %s40
      %p54 = scmp.eq.s32.totalorder %s18, 1
      %p55 = por %p53, %p54
      %p57 = scmp.ne.s32.totalorder %s40, %s56
      %p58 = scmp.eq.s32.totalorder %s18, 0
      %p59 = por %p57, %p58
      %s60 = ssub.s32 %s19, %s31
      %p61 = scmp.eq.s32.totalorder %s60, 0
      %s63 = sadd.s32 %s62, 1
      %s64 = scalar_select %p61, %s62, %s63
      %p67 = pneg %p61
      %p68 = scmp.eq.s32.totalorder %s12, 1
      %p69 = por %p67, %p68
      %p70 = scmp.ne.s32.totalorder %s62, %s65
      %p71 = scmp.eq.s32.totalorder %s12, 0
      %p72 = por %p70, %p71
      %p73 = scmp.ne.s32.totalorder %s62, %s65
      %p74 = scmp.eq.s32.totalorder %s17, 1
      %p75 = por %p73, %p74
      %p76 = scmp.ne.s32.totalorder %s65, %s66
      %p77 = scmp.eq.s32.totalorder %s17, 0
      %p78 = por %p76, %p77
      %p79 = scmp.ne.s32.totalorder %s65, %s66
      %p80 = scmp.eq.s32.totalorder %s18, 1
      %p81 = por %p79, %p80
      %p83 = scmp.ne.s32.totalorder %s66, %s82
      %p84 = scmp.eq.s32.totalorder %s18, 0
      %p85 = por %p83, %p84
      %s86 = ssub.s32 %s19, %s31
      %p87 = scmp.eq.s32.totalorder %s86, 0
      %s89 = sadd.s32 %s88, 1
      %s90 = scalar_select %p87, %s88, %s89
      %p93 = pneg %p87
      %p94 = scmp.eq.s32.totalorder %s12, 1
      %p95 = por %p93, %p94
      %p96 = scmp.ne.s32.totalorder %s88, %s91
      %p97 = scmp.eq.s32.totalorder %s12, 0
      %p98 = por %p96, %p97
      %p99 = scmp.ne.s32.totalorder %s88, %s91
      %p100 = scmp.eq.s32.totalorder %s17, 1
      %p101 = por %p99, %p100
      %p102 = scmp.ne.s32.totalorder %s91, %s92
      %p103 = scmp.eq.s32.totalorder %s17, 0
      %p104 = por %p102, %p103
      %p105 = scmp.ne.s32.totalorder %s91, %s92
      %p106 = scmp.eq.s32.totalorder %s18, 1
      %p107 = por %p105, %p106
      %p109 = scmp.ne.s32.totalorder %s92, %s108
      %p110 = scmp.eq.s32.totalorder %s18, 0
      %p111 = por %p109, %p110
      %s112 = ssub.s32 %s19, %s31
      %s113 = ssub.s32 %s20, %s27
      %s114 = sor.u32 %s112, %s113
      %p115 = scmp.eq.s32.totalorder %s114, 0
      %s117 = sadd.s32 %s116, 1
      %s118 = scalar_select %p115, %s116, %s117
      %p121 = pneg %p115
      %p122 = scmp.eq.s32.totalorder %s12, 1
      %p123 = por %p121, %p122
      %p124 = scmp.ne.s32.totalorder %s116, %s119
      %p125 = scmp.eq.s32.totalorder %s12, 0
      %p126 = por %p124, %p125
      %p127 = scmp.ne.s32.totalorder %s116, %s119
      %p128 = scmp.eq.s32.totalorder %s17, 1
      %p129 = por %p127, %p128
      %p130 = scmp.ne.s32.totalorder %s119, %s120
      %p131 = scmp.eq.s32.totalorder %s17, 0
      %p132 = por %p130, %p131
      %p133 = scmp.ne.s32.totalorder %s119, %s120
      %p134 = scmp.eq.s32.totalorder %s18, 1
      %p135 = por %p133, %p134
      %p137 = scmp.ne.s32.totalorder %s120, %s136
      %p138 = scmp.eq.s32.totalorder %s18, 0
      %p139 = por %p137, %p138
      %p140 = scmp.le.s32.totalorder 1, %s12
      %p141 = scmp.lt.s32.totalorder %s12, 3
      %p142 = pnand %p140, %p141
      %p143 = pneg %p142
      // Predicated region
      $region9: #{tpu_custom_call.1} parent=5 // pred_check
        _
      $region10: #{tpu_custom_call.1} parent=5 // pred_check_branch
        %145 = sbr.rel (%p142) target = $region12
      $region11: #{tpu_custom_call.1} parent=5 // pred_region
        %s146 = ssub.s32 %s12, 1
      $region12: #{tpu_custom_call.1} parent=5 // pred_fallthru
        _
      %p147 = scmp.lt.s32.totalorder %s12, 2
      // Predicated region
      $region13: #{tpu_custom_call.1} parent=5 // pred_check
        %p148 = pneg %p147
      $region14: #{tpu_custom_call.1} parent=5 // pred_check_branch
        %150 = sbr.rel (%p148) target = $region16
      $region15: #{tpu_custom_call.1} parent=5 // pred_region
        // Predicated region
        $region17: #{tpu_custom_call.1} parent=15 // pred_check
          %p151 = pneg %p46
        $region18: #{tpu_custom_call.1} parent=15 // pred_check_branch
          %153 = sbr.rel (%p151) target = $region20
        $region19: #{tpu_custom_call.1} parent=15 // pred_region
          %p154 = scmp.lt.s32.totalorder %s19, 1
          %s155 = scalar_select %p154, %s19, 1
          %p156 = scmp.lt.s32.totalorder %s20, 0
          %s157 = scalar_select %p156, %s20, 0
          %s158 = sadd.s32 %s157, %s155
          %s159 = smul.addr %s158, 8
          %s160 = scalar_lea.vmem %s0, %s159
        $region20: #{tpu_custom_call.1} parent=15 // pred_fallthru
          _
        // Predicated region
        $region21: #{tpu_custom_call.1} parent=15 // pred_check
          %p161 = pneg %p72
        $region22: #{tpu_custom_call.1} parent=15 // pred_check_branch
          %163 = sbr.rel (%p161) target = $region24
        $region23: #{tpu_custom_call.1} parent=15 // pred_region
          %p164 = scmp.lt.s32.totalorder %s19, 1
          %s165 = scalar_select %p164, %s19, 1
          %s166 = smul.addr %s165, 8
          %s167 = smul.addr %s166, 4
          %s168 = scalar_lea.vmem %s1, %s167
        $region24: #{tpu_custom_call.1} parent=15 // pred_fallthru
          _
        // Predicated region
        $region25: #{tpu_custom_call.1} parent=15 // pred_check
          %p169 = pneg %p98
        $region26: #{tpu_custom_call.1} parent=15 // pred_check_branch
          %171 = sbr.rel (%p169) target = $region28
        $region27: #{tpu_custom_call.1} parent=15 // pred_region
          %p172 = scmp.lt.s32.totalorder %s19, 1
          %s173 = scalar_select %p172, %s19, 1
          %s174 = scalar_lea.vmem %s2, %s173
        $region28: #{tpu_custom_call.1} parent=15 // pred_fallthru
          _
      $region16: #{tpu_custom_call.1} parent=5 // pred_fallthru
        _
      %p175 = scmp.le.s32.totalorder 1, %s12
      %p176 = scmp.lt.s32.totalorder %s12, 3
      %p177 = pnand %p175, %p176
      %p178 = pneg %p177
      // Predicated region
      $region29: #{tpu_custom_call.1} parent=5 // pred_check
        _
      $region30: #{tpu_custom_call.1} parent=5 // pred_check_branch
        %180 = sbr.rel (%p177) target = $region32
      $region31: #{tpu_custom_call.1} parent=5 // pred_region
        %s181 = ssub.s32 %s12, 1
        %p182 = scmp.lt.s32.totalorder %s21, 1
        %s183 = scalar_select %p182, %s21, 1
        %p184 = scmp.lt.s32.totalorder %s22, 0
        %s185 = scalar_select %p184, %s22, 0
        %s186 = sadd.s32 %s185, %s183
        %s187 = smul.addr %s186, 8
        %s188 = scalar_lea.vmem %s0, %s187
        %p189 = pneg %p52
        %p190 = pneg %p49
        %p191 = scmp.lt.s32.totalorder %s21, 1
        %s192 = scalar_select %p191, %s21, 1
        %s193 = smul.addr %s192, 8
        %s194 = smul.addr %s193, 4
        %s195 = scalar_lea.vmem %s1, %s194
        %p196 = pneg %p78
        %p197 = pneg %p75
        %p198 = scmp.lt.s32.totalorder %s21, 1
        %s199 = scalar_select %p198, %s21, 1
        %s200 = scalar_lea.vmem %s2, %s199
        %p201 = pneg %p104
        %p202 = pneg %p101
        %p203 = pneg %p132
        %p204 = pneg %p129
        %s205 = sand.u32 %s119, 1
        %s206 = scalar_lea.sflag [#allocation3], %s205
        %s207 = sand.u32 %s119, 1
        %s208 = smul.addr %s207, 4
        %s209 = scalar_lea.vmem [#allocation2], %s208
        %p210 = scmp.lt.s32.totalorder %s21, 1
        %s211 = scalar_select %p210, %s21, 1
        %p212 = scmp.lt.s32.totalorder %s22, 0
        %s213 = scalar_select %p212, %s22, 0
        %s214 = sadd.s32 %s213, %s211
        %s215 = smul.addr %s214, 8
        %s216 = scalar_lea.vmem %s0, %s215
        %p217 = scmp.lt.s32.totalorder %s21, 1
        %s218 = scalar_select %p217, %s21, 1
        %s219 = smul.addr %s218, 8
        %s220 = smul.addr %s219, 4
        %s221 = scalar_lea.vmem %s1, %s220
        %p222 = scmp.lt.s32.totalorder %s21, 1
        %s223 = scalar_select %p222, %s21, 1
        %s224 = scalar_lea.vmem %s2, %s223
        %v226 = vld [vmem:[%s216] sm:$0xff]
        %v227 = vpack.c.bf16 %v226, %v226
        %v228 = vld [vmem:[%s221] sm:$0xf]
        %v229 = vld [vmem:[%s221 + $0x4] sm:$0xf]
        %v230 = vld [vmem:[%s221 + $0x8] sm:$0xf]
        %v231 = vld [vmem:[%s221 + $0xc] sm:$0xf]
        %v232 = vld [vmem:[%s221 + $0x10] sm:$0xf]
        %v233 = vld [vmem:[%s221 + $0x14] sm:$0xf]
        %v234 = vld [vmem:[%s221 + $0x18] sm:$0xf]
        %v235 = vld [vmem:[%s221 + $0x1c] sm:$0xf]
        %v236 = vld [vmem:[%s224] sm:$0x1]
        %v238 = vperm.slane %v236, 0
        %v248 = vunpack.c.l.b16 %v228
        %v249 = vunpack.c.l.b16 %v229
        %v250 = vunpack.c.l.b16 %v230
        %v251 = vunpack.c.l.b16 %v231
        %v252 = vunpack.c.l.b16 %v232
        %v253 = vunpack.c.l.b16 %v233
        %v254 = vunpack.c.l.b16 %v234
        %v255 = vunpack.c.l.b16 %v235
        %v256 = vpack.c.b16 %v249, %v248
        %v257 = vpack.c.b16 %v251, %v250
        %v258 = vpack.c.b16 %v253, %v252
        %v259 = vpack.c.b16 %v255, %v254
        %vm264 = vcmask 523264
        %v266 = vsel %vm264, %v227, 0
        %268 = vmatpush.bf16.msra.mxu0 0
        %269 = vmatpush.bf16.msra.mxu0 0
        %270 = vmatpush.bf16.msra.mxu0 0
        %271 = vmatpush.bf16.msra.mxu0 0
        %272 = vmatpush.bf16.msra.mxu0 %v259
        %273 = vmatpush.bf16.msra.mxu0 %v258
        %274 = vmatpush.bf16.msra.mxu0 %v257
        %275 = vmatpush.bf16.msra.mxu0 %v256
        %276 = vmatmul.bf16.gmra.mxu0 %v266
        %v277 = vpop.f32.mrf.mxu0
        %v278 = vadd.f32 %v238, %v277
        %v279 = vpop.f32.mrf.mxu0
        %280 = vdwg.mxu0
        %v281 = vmax.f32 %v278, 0.0
        %v282 = vpack.c.bf16 %v281, %v281
        %vm283 = vcmask 257024
        %284 = vst.msk [vmem:[%s209] sm:$0xf] %vm283, %v282
        %s285 = sand.u32 %s119, 1
        %s286 = scalar_lea.sflag [#allocation3], %s285
        %s287 = sand.u32 %s119, 1
        %s288 = smul.addr %s287, 4
        %s289 = scalar_lea.vmem [#allocation2], %s288
        // Predicated region
        $region33: #{tpu_custom_call.1} parent=31 // pred_check
          %p290 = pneg %p129
        $region34: #{tpu_custom_call.1} parent=31 // pred_check_branch
          %292 = sbr.rel (%p290) target = $region36
        $region35: #{tpu_custom_call.1} parent=31 // pred_region
          %294 = vsyncadd %s286, 0
          %s295 = sadd.s32 %s22, %s21
          %s296 = smul.addr %s295, 4
          %s297 = scalar_lea.hbm %s3, %s296
          %s299 = sshll.u32 %s289, 4
          %s300 = int_to_ptr.vmem [resolvable:$true] %s299
          %s301 = sshll.u32 %s297, 4
          %s302 = int_to_ptr.hbm [resolvable:$true] %s301
          %304 = dma.vmem_to_hbm [thread:$0]  %s300, 64, %s302, %s286
        $region36: #{tpu_custom_call.1} parent=31 // pred_fallthru
          _
      $region32: #{tpu_custom_call.1} parent=5 // pred_fallthru
        _
      %p305 = scmp.le.s32.totalorder 2, %s12
      // Predicated region
      $region37: #{tpu_custom_call.1} parent=5 // pred_check
        %p306 = pneg %p305
      $region38: #{tpu_custom_call.1} parent=5 // pred_check_branch
        %308 = sbr.rel (%p306) target = $region40
      $region39: #{tpu_custom_call.1} parent=5 // pred_region
        %s309 = ssub.s32 %s12, 2
        // Predicated region
        $region41: #{tpu_custom_call.1} parent=39 // pred_check
          %p310 = pneg %p135
        $region42: #{tpu_custom_call.1} parent=39 // pred_check_branch
          %312 = sbr.rel (%p310) target = $region44
        $region43: #{tpu_custom_call.1} parent=39 // pred_region
          %s313 = sand.u32 %s120, 1
          %s314 = scalar_lea.sflag [#allocation3], %s313
          %s315 = sand.u32 %s120, 1
          %s316 = smul.addr %s315, 4
          %s317 = scalar_lea.vmem [#allocation2], %s316
          %319 = dma.done %s314, 64
        $region44: #{tpu_custom_call.1} parent=39 // pred_fallthru
          _
      $region40: #{tpu_custom_call.1} parent=5 // pred_fallthru
        _
    $region6: #{tpu_custom_call.1} parent=1 // loop_footer
      %s16 = sadd.s32 1, %s12
    $region7: #{tpu_custom_call.1} parent=1 // loop_footer_branch
      %11 = sbr.rel target = $region3
    $region8: #{tpu_custom_call.1} parent=1 // loop_exit
      _
    %320 = vsyncpa [#allocation3], 1
    %s321 = scalar_lea.sflag [#allocation3], 1
    %322 = vsyncpa %s321, 1

</llo_original>
